<compile_context>
chip_gen: v5e
topology: v5e:2x2
jax: 0.10.0
libtpu: 0.0.40
codegen_flags: <defaults>
</compile_context>

<pallas_src>
import functools

import jax
import jax.numpy as jnp
from jax.experimental import pallas as pl
from jax.experimental.pallas import tpu as pltpu


def _leaky(x):
    return jnp.where(x >= 0, x, 0.01 * x)


# ---------------------------------------------------------------------------
# Fused kernel: one grid step == one packed super-block of Gb graphs.
#   adj_ref : [1, Wn, Wn] f32   block-diagonal packed A_hat^T (source, target)
#   x_ref   : [1, C,  Wn] f32   packed node features, transposed (channels x nodes)
#   other operands are whole-array VMEM residents (weights / folded affines),
#   b2 is a scalar in SMEM.
# Outputs (lane-dense):
#   out_ref : [1, 1, Gb*out]    per-graph logits, graph-major / class-minor
#   h_ref   : [1, 1, Wn]        per-graph h rows, graph-major / node-minor
# ---------------------------------------------------------------------------
def gcn_fused_kernel(num_nodes, adj_ref, x_ref, w1t_ref, b1_ref,
                     bn_scale_ref, bn_shift_ref, w2c_ref, b2_ref,
                     seg_ref, segt_ref, fc1w_ref, fc1b_ref, fc2w_ref, fc2b_ref,
                     out_ref, h_ref):
    adj = adj_ref[0]                                    # [Wn, Wn] f32
    xt = x_ref[0]                                       # [C,  Wn] f32

    # conv1 (transposed): h1^T = leaky(W1^T @ x^T @ A_hat^T + b1)
    u = jnp.dot(w1t_ref[...], xt, preferred_element_type=jnp.float32)   # [40, Wn]
    h1 = jnp.dot(u, adj, preferred_element_type=jnp.float32)            # [40, Wn]
    h1 = _leaky(h1 + b1_ref[...])

    # BatchNorm1d(num_nodes), eval mode: per-node affine folded host-side,
    # tiled across the Gb graphs of the packed block (lane-dense [1, Wn]).
    h1 = h1 * bn_scale_ref[...] + bn_shift_ref[...]

    # conv2 (transposed): propagate on the MXU, then the [40]->[1] projection
    # as a VPU broadcast-multiply + sublane reduce (avoids a 1-row matmul).
    v = jnp.dot(h1, adj, preferred_element_type=jnp.float32)            # [40, Wn]
    hrow = jnp.sum(w2c_ref[...] * v, axis=0, keepdims=True) + b2_ref[0, 0]
    hrow = _leaky(hrow)                                                  # [1, Wn]
    h_ref[0] = hrow                                     # lane-dense 128-wide store

    # Graph standardize: per-graph mean / unbiased var via segment-indicator
    # matmuls (keeps everything lane-oriented; no lane->sublane relayout).
    seg = seg_ref[...]                                  # [Wn, Gb]
    segt = segt_ref[...]                                # [Gb, Wn]
    n = num_nodes
    mean = jnp.dot(hrow, seg, preferred_element_type=jnp.float32) * (1.0 / n)
    mean_l = jnp.dot(mean, segt, preferred_element_type=jnp.float32)    # [1, Wn]
    diff = hrow - mean_l
    var = jnp.dot(diff * diff, seg,
                  preferred_element_type=jnp.float32) * (1.0 / (n - 1))  # unbiased
    var_l = jnp.dot(var, segt, preferred_element_type=jnp.float32)      # [1, Wn]
    z = diff / (var_l + 1e-10)                          # reference divides by var

    # Head: block-diagonal-packed fc1 -> leaky -> (dropout = identity) -> fc2,
    # processing all Gb graphs of the super-block in one pass.
    a = jnp.dot(z, fc1w_ref[...], preferred_element_type=jnp.float32) + fc1b_ref[...]
    a = _leaky(a)
    # TODO(synk): training-mode dropout (p=0.5) and BatchNorm batch statistics
    # are not implemented; eval-mode semantics are used.
    out_ref[0] = (jnp.dot(a, fc2w_ref[...], preferred_element_type=jnp.float32)
                  + fc2b_ref[...])


def gcn_net_fused(adj_p, x_p, w1t, b1_col, bn_scale, bn_shift, w2_col, b2,
                  seg, segt, fc1w_p, fc1b_p, fc2w_p, fc2b_p, num_nodes):
    num_blocks, _, wn = adj_p.shape
    c = x_p.shape[1]
    gb = seg.shape[1]
    head_out = fc2w_p.shape[1]          # Gb * out_channels
    hid_packed = fc1w_p.shape[1]        # Gb * 50

    vmem = pl.BlockSpec(memory_space=pltpu.MemorySpace.VMEM)
    smem = pl.BlockSpec(memory_space=pltpu.MemorySpace.SMEM)

    # Advisory cost hint so XLA schedules the scatter-built adjacency and the
    # kernel launch sensibly.
    flops = 2 * num_blocks * (40 * c * wn + 2 * 40 * wn * wn + 4 * wn * gb
                              + wn * hid_packed + hid_packed * head_out)
    bytes_accessed = 4 * (adj_p.size + x_p.size + fc1w_p.size + fc2w_p.size
                          + seg.size + segt.size
                          + num_blocks * (wn + head_out))

    out, h = pl.pallas_call(
        functools.partial(gcn_fused_kernel, num_nodes),
        grid=(num_blocks,),
        out_shape=(jax.ShapeDtypeStruct((num_blocks, 1, head_out), jnp.float32),
                   jax.ShapeDtypeStruct((num_blocks, 1, wn), jnp.float32)),
        in_specs=[
            pl.BlockSpec((1, wn, wn), lambda g: (g, 0, 0)),   # packed A_hat^T
            pl.BlockSpec((1, c, wn), lambda g: (g, 0, 0)),    # packed x^T
            vmem,   # w1^T           [40, C]       f32
            vmem,   # b1             [40, 1]       f32
            vmem,   # bn_scale       [1, Wn]       f32 (lane-dense, tiled)
            vmem,   # bn_shift       [1, Wn]       f32
            vmem,   # w2 column      [40, 1]       f32
            smem,   # b2             (1, 1)        f32 scalar
            vmem,   # seg            [Wn, Gb]      f32 segment indicator
            vmem,   # seg^T          [Gb, Wn]      f32
            vmem,   # fc1 packed     [Wn, Gb*50]   f32 block-diagonal
            vmem,   # fc1_b packed   [1, Gb*50]    f32
            vmem,   # fc2 packed     [Gb*50, Gb*out] f32 block-diagonal
            vmem,   # fc2_b packed   [1, Gb*out]   f32
        ],
        out_specs=(pl.BlockSpec((1, 1, head_out), lambda g: (g, 0, 0)),
                   pl.BlockSpec((1, 1, wn), lambda g: (g, 0, 0))),
        compiler_params=pltpu.CompilerParams(dimension_semantics=("parallel",)),
        cost_estimate=pl.CostEstimate(flops=flops, transcendentals=0,
                                      bytes_accessed=bytes_accessed),
    )(adj_p, x_p, w1t, b1_col, bn_scale, bn_shift, w2_col, b2,
      seg, segt, fc1w_p, fc1b_p, fc2w_p, fc2b_p)

    return out, h


# ---------------------------------------------------------------------------
# Host-side glue: normalized adjacency built DIRECTLY in the packed
# block-diagonal layout, parameter folding, graph packing / unpacking.
# ---------------------------------------------------------------------------
def build_packed_norm_adj_t(edge_index, edge_weight, num_graphs, num_nodes,
                            graphs_per_block, num_blocks):
    """Packed A_hat^T: adj[block, source_lane, target_lane] with PyG gcn_norm
    semantics (self loops of weight 1, symmetric D^-1/2 (A+I) D^-1/2).
    Assumes the batched graph is block-diagonal (edges stay inside a graph)."""
    src, dst = edge_index[0], edge_index[1]
    nt = num_graphs * num_nodes
    wn = graphs_per_block * num_nodes

    deg = jnp.ones((nt,), jnp.float32).at[dst].add(edge_weight)   # self loop seeded
    dinv = jnp.where(deg > 0, jax.lax.rsqrt(deg), 0.0)
    vals = dinv[dst] * edge_weight * dinv[src]

    g = dst // num_nodes                       # graph id (block-diagonal assumption)
    blk = g // graphs_per_block
    lg = g % graphs_per_block
    row = lg * num_nodes + src % num_nodes     # source lane within packed block
    col = lg * num_nodes + dst % num_nodes     # target lane within packed block

    adj = jnp.zeros((num_blocks, wn, wn), jnp.float32)
    adj = adj.at[blk, row, col].add(vals)

    # normalized self loops for every real node (padded graphs stay all-zero)
    node = jnp.arange(nt, dtype=jnp.int32)
    ng = node // num_nodes
    pos = (ng % graphs_per_block) * num_nodes + node % num_nodes
    adj = adj.at[ng // graphs_per_block, pos, pos].add(dinv * dinv)
    return adj


def init_params(key, in_channels, out_channels, num_nodes):
    ks = jax.random.split(key, 6)
    s = 0.1
    return {
        "w1": s * jax.random.normal(ks[0], (in_channels, 40), jnp.float32),
        "b1": jnp.zeros((40,), jnp.float32),
        "bn_gamma": jnp.ones((num_nodes,), jnp.float32),
        "bn_beta": jnp.zeros((num_nodes,), jnp.float32),
        "bn_mean": jnp.zeros((num_nodes,), jnp.float32),   # running stats (eval)
        "bn_var": jnp.ones((num_nodes,), jnp.float32),
        "w2": s * jax.random.normal(ks[1], (40, 1), jnp.float32),
        "b2": jnp.zeros((1,), jnp.float32),
        "fc1_w": s * jax.random.normal(ks[2], (num_nodes, 50), jnp.float32),
        "fc1_b": s * jax.random.normal(ks[3], (50,), jnp.float32),
        "fc2_w": s * jax.random.normal(ks[4], (50, out_channels), jnp.float32),
        "fc2_b": s * jax.random.normal(ks[5], (out_channels,), jnp.float32),
    }


def gcn_net_forward(params, x, edge_index, edge_attr, num_graphs, num_nodes):
    c = x.shape[1]
    out_channels = params["fc2_w"].shape[1]
    edge_weight = edge_attr[:, 0]

    # Graphs per packed super-block: fill the 128-lane vreg / MXU width.
    # TODO(synk): on v6e/v7x a 256-lane super-block (gb*num_nodes == 256) matches
    # the 2x256 MXU even better; 128 is the portable choice (native on v5e).
    gb = max(1, 128 // num_nodes) if num_nodes <= 128 else 1
    num_blocks = -(-num_graphs // gb)          # ceil
    g_pad = num_blocks * gb
    wn = gb * num_nodes

    adj_p = build_packed_norm_adj_t(edge_index, edge_weight, num_graphs,
                                    num_nodes, gb, num_blocks)

    x3 = x.reshape(num_graphs, num_nodes, c)
    x3 = jnp.pad(x3, ((0, g_pad - num_graphs), (0, 0), (0, 0)))
    x_p = jnp.transpose(x3.reshape(num_blocks, wn, c), (0, 2, 1))        # [nb, C, Wn]

    # small f32 params: BN eval affine folded + tiled lane-dense, packed head.
    w1t = params["w1"].T                                                 # [40, C]
    b1_col = params["b1"].reshape(-1, 1)                                 # [40, 1]
    bn_scale_n = params["bn_gamma"] * jax.lax.rsqrt(params["bn_var"] + 1e-5)
    bn_shift_n = params["bn_beta"] - params["bn_mean"] * bn_scale_n
    bn_scale = jnp.tile(bn_scale_n, gb)[None, :]                         # [1, Wn]
    bn_shift = jnp.tile(bn_shift_n, gb)[None, :]
    w2_col = params["w2"]                                                # [40, 1]
    b2 = params["b2"].reshape(1, 1)                                      # SMEM scalar

    eye = jnp.eye(gb, dtype=jnp.float32)
    seg = jnp.kron(eye, jnp.ones((num_nodes, 1), jnp.float32))           # [Wn, Gb]
    segt = seg.T                                                         # [Gb, Wn]
    fc1w_p = jnp.kron(eye, params["fc1_w"])                              # [Wn, Gb*50]
    fc1b_p = jnp.tile(params["fc1_b"], gb)[None, :]                      # [1, Gb*50]
    fc2w_p = jnp.kron(eye, params["fc2_w"])                              # [Gb*50, Gb*out]
    fc2b_p = jnp.tile(params["fc2_b"], gb)[None, :]                      # [1, Gb*out]

    out_p, h_p = gcn_net_fused(adj_p, x_p, w1t, b1_col, bn_scale, bn_shift,
                               w2_col, b2, seg, segt,
                               fc1w_p, fc1b_p, fc2w_p, fc2b_p, num_nodes)

    out = out_p.reshape(g_pad, out_channels)[:num_graphs]
    h = h_p.reshape(g_pad, num_nodes)[:num_graphs]
    return out, h


if __name__ == "__main__":
    key = jax.random.PRNGKey(0)

    # small shapes consistent with the module
    num_graphs = 2
    num_nodes = 16          # nodes per graph (== BatchNorm1d / fc1 feature dim)
    in_channels = 4
    out_channels = 3
    n_total = num_graphs * num_nodes

    k_x, k_w, k_p = jax.random.split(key, 3)

    # node features [N_total, in_channels]
    x = jax.random.normal(k_x, (n_total, in_channels), jnp.float32)

    # block-diagonal batched ring graph: edges i -> i+1 and i+1 -> i per graph
    src_list, dst_list = [], []
    for g in range(num_graphs):
        off = g * num_nodes
        for i in range(num_nodes):
            j = (i + 1) % num_nodes
            src_list += [off + i, off + j]
            dst_list += [off + j, off + i]
    edge_index = jnp.array([src_list, dst_list], dtype=jnp.int32)
    num_edges = edge_index.shape[1]
    edge_attr = jax.random.uniform(k_w, (num_edges, 2), jnp.float32,
                                   minval=0.1, maxval=1.0)

    params = init_params(k_p, in_channels, out_channels, num_nodes)

    fwd = jax.jit(gcn_net_forward, static_argnums=(4, 5))
    out, h = fwd(params, x, edge_index, edge_attr, num_graphs, num_nodes)
    jax.block_until_ready((out, h))

    assert out.shape == (num_graphs, out_channels)
    assert h.shape == (num_graphs, num_nodes)
    assert bool(jnp.all(jnp.isfinite(out))) and bool(jnp.all(jnp.isfinite(h)))
    print("KERNEL_OK")
</pallas_src>

<mosaic_0001>
module attributes {stable_mosaic.version = 11 : i64} {
  func.func @gcn_fused_kernel(%arg0: i32, %arg1: memref<1x128x128xf32, #tpu.memory_space<vmem>>, %arg2: memref<1x4x128xf32, #tpu.memory_space<vmem>>, %arg3: memref<40x4xf32, #tpu.memory_space<vmem>>, %arg4: memref<40x1xf32, #tpu.memory_space<vmem>>, %arg5: memref<1x128xf32, #tpu.memory_space<vmem>>, %arg6: memref<1x128xf32, #tpu.memory_space<vmem>>, %arg7: memref<40x1xf32, #tpu.memory_space<vmem>>, %arg8: memref<1x1xf32, #tpu.memory_space<smem>>, %arg9: memref<128x8xf32, #tpu.memory_space<vmem>>, %arg10: memref<8x128xf32, #tpu.memory_space<vmem>>, %arg11: memref<128x400xf32, #tpu.memory_space<vmem>>, %arg12: memref<1x400xf32, #tpu.memory_space<vmem>>, %arg13: memref<400x24xf32, #tpu.memory_space<vmem>>, %arg14: memref<1x24xf32, #tpu.memory_space<vmem>>, %arg15: memref<1x1x24xf32, #tpu.memory_space<vmem>>, %arg16: memref<1x1x128xf32, #tpu.memory_space<vmem>>) attributes {dimension_semantics = [#tpu.dimension_semantics<parallel>], iteration_bounds = array<i64: 1>, scalar_prefetch = 0 : i64, scratch_operands = 0 : i64, tpu.core_type = #tpu.core_type<tc>, window_params = [{transform_indices = @transform_0, window_bounds = array<i64: 1, 128, 128>}, {transform_indices = @transform_1, window_bounds = array<i64: 1, 4, 128>}, {pipeline_mode = #tpu.pipeline_mode<synchronous>, transform_indices = @transform_2, window_bounds = array<i64: 40, 4>}, {pipeline_mode = #tpu.pipeline_mode<synchronous>, transform_indices = @transform_3, window_bounds = array<i64: 40, 1>}, {pipeline_mode = #tpu.pipeline_mode<synchronous>, transform_indices = @transform_4, window_bounds = array<i64: 1, 128>}, {pipeline_mode = #tpu.pipeline_mode<synchronous>, transform_indices = @transform_5, window_bounds = array<i64: 1, 128>}, {pipeline_mode = #tpu.pipeline_mode<synchronous>, transform_indices = @transform_6, window_bounds = array<i64: 40, 1>}, {transform_indices = @transform_7, window_bounds = array<i64: 1, 1>}, {pipeline_mode = #tpu.pipeline_mode<synchronous>, transform_indices = @transform_8, window_bounds = array<i64: 128, 8>}, {pipeline_mode = #tpu.pipeline_mode<synchronous>, transform_indices = @transform_9, window_bounds = array<i64: 8, 128>}, {pipeline_mode = #tpu.pipeline_mode<synchronous>, transform_indices = @transform_10, window_bounds = array<i64: 128, 400>}, {pipeline_mode = #tpu.pipeline_mode<synchronous>, transform_indices = @transform_11, window_bounds = array<i64: 1, 400>}, {pipeline_mode = #tpu.pipeline_mode<synchronous>, transform_indices = @transform_12, window_bounds = array<i64: 400, 24>}, {pipeline_mode = #tpu.pipeline_mode<synchronous>, transform_indices = @transform_13, window_bounds = array<i64: 1, 24>}, {transform_indices = @transform_14, window_bounds = array<i64: 1, 1, 24>}, {transform_indices = @transform_15, window_bounds = array<i64: 1, 1, 128>}]} {
    %c0 = arith.constant 0 : index
    %c0_0 = arith.constant 0 : index
    %c0_1 = arith.constant 0 : index
    %0 = vector.load %arg1[%c0, %c0_0, %c0_1] : memref<1x128x128xf32, #tpu.memory_space<vmem>>, vector<1x128x128xf32>
    %1 = vector.shape_cast %0 : vector<1x128x128xf32> to vector<128x128xf32>
    %c0_2 = arith.constant 0 : index
    %c0_3 = arith.constant 0 : index
    %c0_4 = arith.constant 0 : index
    %2 = vector.load %arg2[%c0_2, %c0_3, %c0_4] : memref<1x4x128xf32, #tpu.memory_space<vmem>>, vector<1x4x128xf32>
    %3 = vector.shape_cast %2 : vector<1x4x128xf32> to vector<4x128xf32>
    %c0_5 = arith.constant 0 : index
    %c0_6 = arith.constant 0 : index
    %4 = vector.load %arg3[%c0_5, %c0_6] : memref<40x4xf32, #tpu.memory_space<vmem>>, vector<40x4xf32>
    %cst = arith.constant dense<0.000000e+00> : vector<40x128xf32>
    %5 = tpu.matmul %4, %3, %cst {dimension_numbers = #tpu.dot_dimension_numbers<[1], [0], [0], [1], [0, 0, 1, 1], [], []>} : vector<40x4xf32>, vector<4x128xf32>, vector<40x128xf32> -> vector<40x128xf32>
    %cst_7 = arith.constant dense<0.000000e+00> : vector<40x128xf32>
    %6 = tpu.matmul %5, %1, %cst_7 {dimension_numbers = #tpu.dot_dimension_numbers<[1], [0], [0], [1], [0, 0, 1, 1], [], []>} : vector<40x128xf32>, vector<128x128xf32>, vector<40x128xf32> -> vector<40x128xf32>
    %c0_8 = arith.constant 0 : index
    %c0_9 = arith.constant 0 : index
    %7 = vector.load %arg4[%c0_8, %c0_9] : memref<40x1xf32, #tpu.memory_space<vmem>>, vector<40x1xf32>
    %8 = vector.broadcast %7 : vector<40x1xf32> to vector<40x128xf32>
    %9 = arith.addf %6, %8 : vector<40x128xf32>
    %cst_10 = arith.constant 0.000000e+00 : f32
    %10 = vector.broadcast %cst_10 : f32 to vector<40x128xf32>
    %11 = arith.cmpf oge, %9, %10 : vector<40x128xf32>
    %cst_11 = arith.constant 0.00999999977 : f32
    %12 = vector.broadcast %cst_11 : f32 to vector<40x128xf32>
    %13 = arith.mulf %12, %9 : vector<40x128xf32>
    %14 = arith.select %11, %9, %13 : vector<40x128xi1>, vector<40x128xf32>
    %c0_12 = arith.constant 0 : index
    %c0_13 = arith.constant 0 : index
    %15 = vector.load %arg5[%c0_12, %c0_13] : memref<1x128xf32, #tpu.memory_space<vmem>>, vector<1x128xf32>
    %16 = vector.broadcast %15 : vector<1x128xf32> to vector<40x128xf32>
    %17 = arith.mulf %14, %16 : vector<40x128xf32>
    %c0_14 = arith.constant 0 : index
    %c0_15 = arith.constant 0 : index
    %18 = vector.load %arg6[%c0_14, %c0_15] : memref<1x128xf32, #tpu.memory_space<vmem>>, vector<1x128xf32>
    %19 = vector.broadcast %18 : vector<1x128xf32> to vector<40x128xf32>
    %20 = arith.addf %17, %19 : vector<40x128xf32>
    %cst_16 = arith.constant dense<0.000000e+00> : vector<40x128xf32>
    %21 = tpu.matmul %20, %1, %cst_16 {dimension_numbers = #tpu.dot_dimension_numbers<[1], [0], [0], [1], [0, 0, 1, 1], [], []>} : vector<40x128xf32>, vector<128x128xf32>, vector<40x128xf32> -> vector<40x128xf32>
    %c0_17 = arith.constant 0 : index
    %c0_18 = arith.constant 0 : index
    %22 = vector.load %arg7[%c0_17, %c0_18] : memref<40x1xf32, #tpu.memory_space<vmem>>, vector<40x1xf32>
    %23 = vector.broadcast %22 : vector<40x1xf32> to vector<40x128xf32>
    %24 = arith.mulf %23, %21 : vector<40x128xf32>
    %cst_19 = arith.constant dense<0.000000e+00> : vector<128xf32>
    %25 = vector.multi_reduction <add>, %24, %cst_19 [0] : vector<40x128xf32> to vector<128xf32>
    %26 = vector.shape_cast %25 : vector<128xf32> to vector<1x128xf32>
    %c0_20 = arith.constant 0 : index
    %c0_21 = arith.constant 0 : index
    %27 = memref.load %arg8[%c0_20, %c0_21] : memref<1x1xf32, #tpu.memory_space<smem>>
    %28 = vector.broadcast %27 : f32 to vector<1x128xf32>
    %29 = arith.addf %26, %28 : vector<1x128xf32>
    %cst_22 = arith.constant 0.000000e+00 : f32
    %30 = vector.broadcast %cst_22 : f32 to vector<1x128xf32>
    %31 = arith.cmpf oge, %29, %30 : vector<1x128xf32>
    %cst_23 = arith.constant 0.00999999977 : f32
    %32 = vector.broadcast %cst_23 : f32 to vector<1x128xf32>
    %33 = arith.mulf %32, %29 : vector<1x128xf32>
    %34 = arith.select %31, %29, %33 : vector<1x128xi1>, vector<1x128xf32>
    %c0_24 = arith.constant 0 : index
    %c0_25 = arith.constant 0 : index
    %c0_26 = arith.constant 0 : index
    %35 = vector.load %arg16[%c0_24, %c0_25, %c0_26] : memref<1x1x128xf32, #tpu.memory_space<vmem>>, vector<1x1x128xf32>
    %36 = vector.shape_cast %35 : vector<1x1x128xf32> to vector<1x128xf32>
    %37 = vector.shape_cast %34 : vector<1x128xf32> to vector<1x1x128xf32>
    tpu.vector_store %arg16[%c0_24, %c0_25, %c0_26], %37 {strides = array<i32>} : memref<1x1x128xf32, #tpu.memory_space<vmem>>, vector<1x1x128xf32>,
    %c0_27 = arith.constant 0 : index
    %c0_28 = arith.constant 0 : index
    %38 = vector.load %arg9[%c0_27, %c0_28] : memref<128x8xf32, #tpu.memory_space<vmem>>, vector<128x8xf32>
    %c0_29 = arith.constant 0 : index
    %c0_30 = arith.constant 0 : index
    %39 = vector.load %arg10[%c0_29, %c0_30] : memref<8x128xf32, #tpu.memory_space<vmem>>, vector<8x128xf32>
    %cst_31 = arith.constant dense<0.000000e+00> : vector<1x8xf32>
    %40 = tpu.matmul %34, %38, %cst_31 {dimension_numbers = #tpu.dot_dimension_numbers<[1], [0], [0], [1], [0, 0, 1, 1], [], []>} : vector<1x128xf32>, vector<128x8xf32>, vector<1x8xf32> -> vector<1x8xf32>
    %cst_32 = arith.constant 6.250000e-02 : f32
    %41 = vector.broadcast %cst_32 : f32 to vector<1x8xf32>
    %42 = arith.mulf %40, %41 : vector<1x8xf32>
    %cst_33 = arith.constant dense<0.000000e+00> : vector<1x128xf32>
    %43 = tpu.matmul %42, %39, %cst_33 {dimension_numbers = #tpu.dot_dimension_numbers<[1], [0], [0], [1], [0, 0, 1, 1], [], []>} : vector<1x8xf32>, vector<8x128xf32>, vector<1x128xf32> -> vector<1x128xf32>
    %44 = arith.subf %34, %43 : vector<1x128xf32>
    %45 = arith.mulf %44, %44 : vector<1x128xf32>
    %cst_34 = arith.constant dense<0.000000e+00> : vector<1x8xf32>
    %46 = tpu.matmul %45, %38, %cst_34 {dimension_numbers = #tpu.dot_dimension_numbers<[1], [0], [0], [1], [0, 0, 1, 1], [], []>} : vector<1x128xf32>, vector<128x8xf32>, vector<1x8xf32> -> vector<1x8xf32>
    %cst_35 = arith.constant 0.0666666701 : f32
    %47 = vector.broadcast %cst_35 : f32 to vector<1x8xf32>
    %48 = arith.mulf %46, %47 : vector<1x8xf32>
    %cst_36 = arith.constant dense<0.000000e+00> : vector<1x128xf32>
    %49 = tpu.matmul %48, %39, %cst_36 {dimension_numbers = #tpu.dot_dimension_numbers<[1], [0], [0], [1], [0, 0, 1, 1], [], []>} : vector<1x8xf32>, vector<8x128xf32>, vector<1x128xf32> -> vector<1x128xf32>
    %cst_37 = arith.constant 1.000000e-10 : f32
    %50 = vector.broadcast %cst_37 : f32 to vector<1x128xf32>
    %51 = arith.addf %49, %50 : vector<1x128xf32>
    %52 = arith.divf %44, %51 : vector<1x128xf32>
    %c0_38 = arith.constant 0 : index
    %c0_39 = arith.constant 0 : index
    %53 = vector.load %arg11[%c0_38, %c0_39] : memref<128x400xf32, #tpu.memory_space<vmem>>, vector<128x400xf32>
    %cst_40 = arith.constant dense<0.000000e+00> : vector<1x400xf32>
    %54 = tpu.matmul %52, %53, %cst_40 {dimension_numbers = #tpu.dot_dimension_numbers<[1], [0], [0], [1], [0, 0, 1, 1], [], []>} : vector<1x128xf32>, vector<128x400xf32>, vector<1x400xf32> -> vector<1x400xf32>
    %c0_41 = arith.constant 0 : index
    %c0_42 = arith.constant 0 : index
    %55 = vector.load %arg12[%c0_41, %c0_42] : memref<1x400xf32, #tpu.memory_space<vmem>>, vector<1x400xf32>
    %56 = arith.addf %54, %55 : vector<1x400xf32>
    %cst_43 = arith.constant 0.000000e+00 : f32
    %57 = vector.broadcast %cst_43 : f32 to vector<1x400xf32>
    %58 = arith.cmpf oge, %56, %57 : vector<1x400xf32>
    %cst_44 = arith.constant 0.00999999977 : f32
    %59 = vector.broadcast %cst_44 : f32 to vector<1x400xf32>
    %60 = arith.mulf %59, %56 : vector<1x400xf32>
    %61 = arith.select %58, %56, %60 : vector<1x400xi1>, vector<1x400xf32>
    %c0_45 = arith.constant 0 : index
    %c0_46 = arith.constant 0 : index
    %62 = vector.load %arg13[%c0_45, %c0_46] : memref<400x24xf32, #tpu.memory_space<vmem>>, vector<400x24xf32>
    %cst_47 = arith.constant dense<0.000000e+00> : vector<1x24xf32>
    %63 = tpu.matmul %61, %62, %cst_47 {dimension_numbers = #tpu.dot_dimension_numbers<[1], [0], [0], [1], [0, 0, 1, 1], [], []>} : vector<1x400xf32>, vector<400x24xf32>, vector<1x24xf32> -> vector<1x24xf32>
    %c0_48 = arith.constant 0 : index
    %c0_49 = arith.constant 0 : index
    %64 = vector.load %arg14[%c0_48, %c0_49] : memref<1x24xf32, #tpu.memory_space<vmem>>, vector<1x24xf32>
    %65 = arith.addf %63, %64 : vector<1x24xf32>
    %c0_50 = arith.constant 0 : index
    %c0_51 = arith.constant 0 : index
    %c0_52 = arith.constant 0 : index
    %66 = vector.load %arg15[%c0_50, %c0_51, %c0_52] : memref<1x1x24xf32, #tpu.memory_space<vmem>>, vector<1x1x24xf32>
    %67 = vector.shape_cast %66 : vector<1x1x24xf32> to vector<1x24xf32>
    %68 = vector.shape_cast %65 : vector<1x24xf32> to vector<1x1x24xf32>
    tpu.vector_store %arg15[%c0_50, %c0_51, %c0_52], %68 {strides = array<i32>} : memref<1x1x24xf32, #tpu.memory_space<vmem>>, vector<1x1x24xf32>,
    return
  }
  func.func @transform_0(%arg0: i32) -> (i32, i32, i32) {
    %c0_i32 = arith.constant 0 : i32
    %c0_i32_0 = arith.constant 0 : i32
    %c0_i32_1 = arith.constant 0 : i32
    return %arg0, %c0_i32, %c0_i32_0 : i32, i32, i32
  }
  func.func @transform_1(%arg0: i32) -> (i32, i32, i32) {
    %c0_i32 = arith.constant 0 : i32
    %c0_i32_0 = arith.constant 0 : i32
    %c0_i32_1 = arith.constant 0 : i32
    return %arg0, %c0_i32, %c0_i32_0 : i32, i32, i32
  }
  func.func @transform_2(%arg0: i32) -> (i32, i32) {
    %c0_i32 = arith.constant 0 : i32
    %c0_i32_0 = arith.constant 0 : i32
    %c0_i32_1 = arith.constant 0 : i32
    return %c0_i32, %c0_i32_0 : i32, i32
  }
  func.func @transform_3(%arg0: i32) -> (i32, i32) {
    %c0_i32 = arith.constant 0 : i32
    %c0_i32_0 = arith.constant 0 : i32
    %c0_i32_1 = arith.constant 0 : i32
    return %c0_i32, %c0_i32_0 : i32, i32
  }
  func.func @transform_4(%arg0: i32) -> (i32, i32) {
    %c0_i32 = arith.constant 0 : i32
    %c0_i32_0 = arith.constant 0 : i32
    %c0_i32_1 = arith.constant 0 : i32
    return %c0_i32, %c0_i32_0 : i32, i32
  }
  func.func @transform_5(%arg0: i32) -> (i32, i32) {
    %c0_i32 = arith.constant 0 : i32
    %c0_i32_0 = arith.constant 0 : i32
    %c0_i32_1 = arith.constant 0 : i32
    return %c0_i32, %c0_i32_0 : i32, i32
  }
  func.func @transform_6(%arg0: i32) -> (i32, i32) {
    %c0_i32 = arith.constant 0 : i32
    %c0_i32_0 = arith.constant 0 : i32
    %c0_i32_1 = arith.constant 0 : i32
    return %c0_i32, %c0_i32_0 : i32, i32
  }
  func.func @transform_7(%arg0: i32) -> (i32, i32) {
    %c0_i32 = arith.constant 0 : i32
    %c0_i32_0 = arith.constant 0 : i32
    %c0_i32_1 = arith.constant 0 : i32
    return %c0_i32, %c0_i32_0 : i32, i32
  }
  func.func @transform_8(%arg0: i32) -> (i32, i32) {
    %c0_i32 = arith.constant 0 : i32
    %c0_i32_0 = arith.constant 0 : i32
    %c0_i32_1 = arith.constant 0 : i32
    return %c0_i32, %c0_i32_0 : i32, i32
  }
  func.func @transform_9(%arg0: i32) -> (i32, i32) {
    %c0_i32 = arith.constant 0 : i32
    %c0_i32_0 = arith.constant 0 : i32
    %c0_i32_1 = arith.constant 0 : i32
    return %c0_i32, %c0_i32_0 : i32, i32
  }
  func.func @transform_10(%arg0: i32) -> (i32, i32) {
    %c0_i32 = arith.constant 0 : i32
    %c0_i32_0 = arith.constant 0 : i32
    %c0_i32_1 = arith.constant 0 : i32
    return %c0_i32, %c0_i32_0 : i32, i32
  }
  func.func @transform_11(%arg0: i32) -> (i32, i32) {
    %c0_i32 = arith.constant 0 : i32
    %c0_i32_0 = arith.constant 0 : i32
    %c0_i32_1 = arith.constant 0 : i32
    return %c0_i32, %c0_i32_0 : i32, i32
  }
  func.func @transform_12(%arg0: i32) -> (i32, i32) {
    %c0_i32 = arith.constant 0 : i32
    %c0_i32_0 = arith.constant 0 : i32
    %c0_i32_1 = arith.constant 0 : i32
    return %c0_i32, %c0_i32_0 : i32, i32
  }
  func.func @transform_13(%arg0: i32) -> (i32, i32) {
    %c0_i32 = arith.constant 0 : i32
    %c0_i32_0 = arith.constant 0 : i32
    %c0_i32_1 = arith.constant 0 : i32
    return %c0_i32, %c0_i32_0 : i32, i32
  }
  func.func @transform_14(%arg0: i32) -> (i32, i32, i32) {
    %c0_i32 = arith.constant 0 : i32
    %c0_i32_0 = arith.constant 0 : i32
    %c0_i32_1 = arith.constant 0 : i32
    return %arg0, %c0_i32, %c0_i32_0 : i32, i32, i32
  }
  func.func @transform_15(%arg0: i32) -> (i32, i32, i32) {
    %c0_i32 = arith.constant 0 : i32
    %c0_i32_0 = arith.constant 0 : i32
    %c0_i32_1 = arith.constant 0 : i32
    return %arg0, %c0_i32, %c0_i32_0 : i32, i32, i32
  }
}

</mosaic_0001>

<llo_original>
// kernel: tile.23
$region0: #{tile.23}
  #allocation0 [shape = 's32[1]{0}', space=sflag, size = 0x4, scoped, tag = 'scoped memory for tile.23']
  %s0 = inlined_call_operand.vmem [shape: f32[16], index: 0, kind: input, shape index: {}]
  %s1 = inlined_call_operand.vmem [shape: f32[8,16], index: 1, kind: output, shape index: {}]
  // Predicated region
  $region2: #{tile.23} parent=0 // pred_check
    _
  $region3: #{tile.23} parent=0 // pred_check_branch
    %3 = sbr.rel (0) target = $region5
  $region4: #{tile.23} parent=0 // pred_region
    _
  $region5: #{tile.23} parent=0 // pred_fallthru
    _
  %v4 = vld [vmem:[%s0] ss:$0 sm:$0xff]
  %5 = vst [vmem:[%s1] sm:$0xff] %v4

// kernel: tile.24
$region0: #{tile.24}
  %s0 = inlined_call_operand.vmem [shape: f32[8,16], index: 0, kind: input, shape index: {}]
  %s1 = inlined_call_operand.vmem [shape: f32[1,128], index: 1, kind: output, shape index: {}]
  $region1: #{tile.24} parent=0
    #allocation0 [shape = 'u8[4096]{0}', space=vmem, size = 0x1000, scoped, tag = 'scoped mem for output reshape']
    %v2 = vld [vmem:[%s0] sm:$0x1]
    %vm3 = vcmask 130048
    %4 = vst.msk [vmem:[#allocation0] sm:$0x1] %vm3, %v2
    %s5 = scalar_lea.vmem %s0, 7
    %v6 = vld [vmem:[%s5] sm:$0x1]
    %7 = vrot.lane.b32.xlu0 %v6, 112
    %v8 = vpop.permute.xlu0 %7
    %vm9 = vcmask 1048448
    %10 = vst.msk [vmem:[#allocation0] sm:$0x1] %vm9, %v8
    %s11 = scalar_lea.vmem %s0, 6
    %v12 = vld [vmem:[%s11] sm:$0x1]
    %13 = vrot.lane.b32.xlu0 %v12, 96
    %v14 = vpop.permute.xlu0 %13
    %vm15 = vcmask 917248
    %16 = vst.msk [vmem:[#allocation0] sm:$0x1] %vm15, %v14
    %s17 = scalar_lea.vmem %s0, 5
    %v18 = vld [vmem:[%s17] sm:$0x1]
    %19 = vrot.lane.b32.xlu0 %v18, 80
    %v20 = vpop.permute.xlu0 %19
    %vm21 = vcmask 786048
    %22 = vst.msk [vmem:[#allocation0] sm:$0x1] %vm21, %v20
    %s23 = scalar_lea.vmem %s0, 4
    %v24 = vld [vmem:[%s23] sm:$0x1]
    %25 = vrot.lane.b32.xlu0 %v24, 64
    %v26 = vpop.permute.xlu0 %25
    %vm27 = vcmask 654848
    %28 = vst.msk [vmem:[#allocation0] sm:$0x1] %vm27, %v26
    %s29 = scalar_lea.vmem %s0, 3
    %v30 = vld [vmem:[%s29] sm:$0x1]
    %31 = vrot.lane.b32.xlu0 %v30, 48
    %v32 = vpop.permute.xlu0 %31
    %vm33 = vcmask 523648
    %34 = vst.msk [vmem:[#allocation0] sm:$0x1] %vm33, %v32
    %s35 = scalar_lea.vmem %s0, 2
    %v36 = vld [vmem:[%s35] sm:$0x1]
    %37 = vrot.lane.b32.xlu0 %v36, 32
    %v38 = vpop.permute.xlu0 %37
    %vm39 = vcmask 392448
    %40 = vst.msk [vmem:[#allocation0] sm:$0x1] %vm39, %v38
    %s41 = scalar_lea.vmem %s0, 1
    %v42 = vld [vmem:[%s41] sm:$0x1]
    %43 = vrot.lane.b32.xlu0 %v42, 16
    %v44 = vpop.permute.xlu0 %43
    %vm45 = vcmask 261248
    %46 = vst.msk [vmem:[#allocation0] sm:$0x1] %vm45, %v44
    %s48 = ssub.s32 2, 1
    %v49 = vld [vmem:[#allocation0] sm:%s48]
    %s51 = ssub.s32 2, 1
    %52 = vst [vmem:[%s1] sm:%s51] %v49

// kernel: tile.33
$region0: #{tile.33}
  #allocation0 [shape = 's32[1]{0}', space=sflag, size = 0x4, scoped, tag = 'scoped memory for tile.33']
  %s0 = inlined_call_operand.vmem [shape: f32[50], index: 0, kind: input, shape index: {}]
  %s1 = inlined_call_operand.vmem [shape: f32[8,50], index: 1, kind: output, shape index: {}]
  // Predicated region
  $region2: #{tile.33} parent=0 // pred_check
    _
  $region3: #{tile.33} parent=0 // pred_check_branch
    %3 = sbr.rel (0) target = $region5
  $region4: #{tile.33} parent=0 // pred_region
    _
  $region5: #{tile.33} parent=0 // pred_fallthru
    _
  %v4 = vld [vmem:[%s0] ss:$0 sm:$0xff]
  %5 = vst [vmem:[%s1] sm:$0xff] %v4

// kernel: tile.34
$region0: #{tile.34}
  %s0 = inlined_call_operand.vmem [shape: f32[8,50], index: 0, kind: input, shape index: {}]
  %s1 = inlined_call_operand.vmem [shape: f32[1,400], index: 1, kind: output, shape index: {}]
  $region1: #{tile.34} parent=0
    #allocation0 [shape = 'u8[16384]{0}', space=vmem, size = 0x4000, scoped, tag = 'scoped mem for output reshape']
    %v2 = vld [vmem:[%s0] sm:$0x1]
    %vm3 = vcmask 408576
    %4 = vst.msk [vmem:[#allocation0] sm:$0x1] %vm3, %v2
    %s5 = scalar_lea.vmem %s0, 5
    %v6 = vld [vmem:[%s5] sm:$0x1]
    %s7 = scalar_lea.vmem %s0, 5
    %v8 = vld [vmem:[%s7] sm:$0x1]
    %vm9 = vcmask 48128
    %v10 = vsel %vm9, %v8, %v6
    %11 = vrot.lane.b32.xlu0 %v10, 122
    %v12 = vpop.permute.xlu0 %11
    %vm13 = vcmask 359424
    %s14 = scalar_lea.vmem [#allocation0], 16
    %15 = vst.msk [vmem:[%s14] sm:$0x1] %vm13, %v12
    %vm16 = vcmask 1048528
    %s17 = scalar_lea.vmem [#allocation0], 8
    %18 = vst.msk [vmem:[%s17] sm:$0x1] %vm16, %v12
    %s19 = scalar_lea.vmem %s0, 2
    %v20 = vld [vmem:[%s19] sm:$0x1]
    %s21 = scalar_lea.vmem %s0, 2
    %v22 = vld [vmem:[%s21] sm:$0x1]
    %vm23 = vcmask 228352
    %v24 = vsel %vm23, %v22, %v20
    %25 = vrot.lane.b32.xlu0 %v24, 100
    %v26 = vpop.permute.xlu0 %25
    %vm27 = vcmask 179200
    %s28 = scalar_lea.vmem [#allocation0], 8
    %29 = vst.msk [vmem:[%s28] sm:$0x1] %vm27, %v26
    %vm30 = vcmask 1048352
    %31 = vst.msk [vmem:[#allocation0] sm:$0x1] %vm30, %v26
    %s32 = scalar_lea.vmem %s0, 7
    %v33 = vld [vmem:[%s32] sm:$0x1]
    %s34 = scalar_lea.vmem %s0, 7
    %v35 = vld [vmem:[%s34] sm:$0x1]
    %vm36 = vcmask 277504
    %v37 = vsel %vm36, %v35, %v33
    %38 = vrot.lane.b32.xlu0 %v37, 94
    %v39 = vpop.permute.xlu0 %38
    %vm40 = vcmask 130048
    %s41 = scalar_lea.vmem [#allocation0], 24
    %42 = vst.msk [vmem:[%s41] sm:$0x1] %vm40, %v39
    %vm43 = vcmask 1048304
    %s44 = scalar_lea.vmem [#allocation0], 16
    %45 = vst.msk [vmem:[%s44] sm:$0x1] %vm43, %v39
    %s46 = scalar_lea.vmem %s0, 4
    %v47 = vld [vmem:[%s46] sm:$0x1]
    %48 = vrot.lane.b32.xlu0 %v47, 72
    %v49 = vpop.permute.xlu0 %48
    %vm50 = vcmask 998976
    %s51 = scalar_lea.vmem [#allocation0], 8
    %52 = vst.msk [vmem:[%s51] sm:$0x1] %vm50, %v49
    %s53 = scalar_lea.vmem %s0, 1
    %v54 = vld [vmem:[%s53] sm:$0x1]
    %55 = vrot.lane.b32.xlu0 %v54, 50
    %v56 = vpop.permute.xlu0 %55
    %vm57 = vcmask 818576
    %58 = vst.msk [vmem:[#allocation0] sm:$0x1] %vm57, %v56
    %s59 = scalar_lea.vmem %s0, 6
    %v60 = vld [vmem:[%s59] sm:$0x1]
    %61 = vrot.lane.b32.xlu0 %v60, 44
    %v62 = vpop.permute.xlu0 %61
    %vm63 = vcmask 769376
    %s64 = scalar_lea.vmem [#allocation0], 16
    %65 = vst.msk [vmem:[%s64] sm:$0x1] %vm63, %v62
    %s66 = scalar_lea.vmem %s0, 3
    %v67 = vld [vmem:[%s66] sm:$0x1]
    %68 = vrot.lane.b32.xlu0 %v67, 22
    %v69 = vpop.permute.xlu0 %68
    %vm70 = vcmask 588976
    %s71 = scalar_lea.vmem [#allocation0], 8
    %72 = vst.msk [vmem:[%s71] sm:$0x1] %vm70, %v69
    %s74 = ssub.s32 2, 1
    %v75 = vld [vmem:[#allocation0] sm:%s74]
    %s77 = ssub.s32 2, 1
    %78 = vst [vmem:[%s1] sm:%s77] %v75
    %s79 = scalar_lea.vmem [#allocation0], 8
    %v80 = vld [vmem:[%s79] sm:%s74]
    %s82 = ssub.s32 2, 1
    %s83 = scalar_lea.vmem %s1, 1
    %84 = vst [vmem:[%s83] sm:%s82] %v80
    %s85 = scalar_lea.vmem [#allocation0], 16
    %v86 = vld [vmem:[%s85] sm:%s74]
    %s88 = ssub.s32 2, 1
    %s89 = scalar_lea.vmem %s1, 2
    %90 = vst [vmem:[%s89] sm:%s88] %v86
    %s91 = scalar_lea.vmem [#allocation0], 24
    %v92 = vld [vmem:[%s91] sm:%s74]
    %s94 = ssub.s32 2, 1
    %s95 = scalar_lea.vmem %s1, 3
    %96 = vst [vmem:[%s95] sm:%s94] %v92

// kernel: tile.38
$region0: #{tile.38}
  #allocation0 [shape = 's32[1]{0}', space=sflag, size = 0x4, scoped, tag = 'scoped memory for tile.38']
  %s0 = inlined_call_operand.vmem [shape: f32[3], index: 0, kind: input, shape index: {}]
  %s1 = inlined_call_operand.vmem [shape: f32[8,3], index: 1, kind: output, shape index: {}]
  // Predicated region
  $region2: #{tile.38} parent=0 // pred_check
    _
  $region3: #{tile.38} parent=0 // pred_check_branch
    %3 = sbr.rel (0) target = $region5
  $region4: #{tile.38} parent=0 // pred_region
    _
  $region5: #{tile.38} parent=0 // pred_fallthru
    _
  %v4 = vld [vmem:[%s0] ss:$0 sm:$0xff]
  %5 = vst [vmem:[%s1] sm:$0xff] %v4

// kernel: tile.39
$region0: #{tile.39}
  %s0 = inlined_call_operand.vmem [shape: f32[8,3], index: 0, kind: input, shape index: {}]
  %s1 = inlined_call_operand.vmem [shape: f32[1,24], index: 1, kind: output, shape index: {}]
  $region1: #{tile.39} parent=0
    #allocation0 [shape = 'u8[4096]{0}', space=vmem, size = 0x1000, scoped, tag = 'scoped mem for output reshape']
    %v2 = vld [vmem:[%s0] sm:$0x1]
    %vm3 = vcmask 23552
    %4 = vst.msk [vmem:[#allocation0] sm:$0x1] %vm3, %v2
    %s5 = scalar_lea.vmem %s0, 7
    %v6 = vld [vmem:[%s5] sm:$0x1]
    %7 = vrot.lane.b32.xlu0 %v6, 21
    %v8 = vpop.permute.xlu0 %7
    %vm9 = vcmask 195752
    %10 = vst.msk [vmem:[#allocation0] sm:$0x1] %vm9, %v8
    %s11 = scalar_lea.vmem %s0, 6
    %v12 = vld [vmem:[%s11] sm:$0x1]
    %13 = vrot.lane.b32.xlu0 %v12, 18
    %v14 = vpop.permute.xlu0 %13
    %vm15 = vcmask 171152
    %16 = vst.msk [vmem:[#allocation0] sm:$0x1] %vm15, %v14
    %s17 = scalar_lea.vmem %s0, 5
    %v18 = vld [vmem:[%s17] sm:$0x1]
    %19 = vrot.lane.b32.xlu0 %v18, 15
    %v20 = vpop.permute.xlu0 %19
    %vm21 = vcmask 146552
    %22 = vst.msk [vmem:[#allocation0] sm:$0x1] %vm21, %v20
    %s23 = scalar_lea.vmem %s0, 4
    %v24 = vld [vmem:[%s23] sm:$0x1]
    %25 = vrot.lane.b32.xlu0 %v24, 12
    %v26 = vpop.permute.xlu0 %25
    %vm27 = vcmask 121952
    %28 = vst.msk [vmem:[#allocation0] sm:$0x1] %vm27, %v26
    %s29 = scalar_lea.vmem %s0, 3
    %v30 = vld [vmem:[%s29] sm:$0x1]
    %31 = vrot.lane.b32.xlu0 %v30, 9
    %v32 = vpop.permute.xlu0 %31
    %vm33 = vcmask 97352
    %34 = vst.msk [vmem:[#allocation0] sm:$0x1] %vm33, %v32
    %s35 = scalar_lea.vmem %s0, 2
    %v36 = vld [vmem:[%s35] sm:$0x1]
    %37 = vrot.lane.b32.xlu0 %v36, 6
    %v38 = vpop.permute.xlu0 %37
    %vm39 = vcmask 72752
    %40 = vst.msk [vmem:[#allocation0] sm:$0x1] %vm39, %v38
    %s41 = scalar_lea.vmem %s0, 1
    %v42 = vld [vmem:[%s41] sm:$0x1]
    %43 = vrot.lane.b32.xlu0 %v42, 3
    %v44 = vpop.permute.xlu0 %43
    %vm45 = vcmask 48152
    %46 = vst.msk [vmem:[#allocation0] sm:$0x1] %vm45, %v44
    %s48 = ssub.s32 2, 1
    %v49 = vld [vmem:[#allocation0] sm:%s48]
    %s51 = ssub.s32 2, 1
    %52 = vst [vmem:[%s1] sm:%s51] %v49

// kernel: gcn_net_forward.1
$region0: #{gcn_net_forward.1}
  #allocation0 [shape = 'u32[]', space=smem, size = 0x4, offset = 0x4, fixed_abs, tag = 'smem constant byte address 0x4 - core index']
  #allocation1 [shape = 'u32[72,128]{1,0:T(1,128)}', space=vmem, size = 0x9000, scoped, tag = 'internal scratch']
  #allocation2 [shape = 'f32[1,1]{1,0:T(1,128)S(6)}', space=smem, size = 0x200, scoped, tag = 'scoped memory for gcn_net_forward.1']
  %s0 = inlined_call_operand.vmem [shape: f32[1,128,128], index: 0, kind: input, shape index: {}]
  %s1 = inlined_call_operand.vmem [shape: f32[1,4,128], index: 1, kind: input, shape index: {}]
  %s2 = inlined_call_operand.vmem [shape: f32[40,4], index: 2, kind: input, shape index: {}]
  %s3 = inlined_call_operand.vmem [shape: f32[40,1], index: 3, kind: input, shape index: {}]
  %s4 = inlined_call_operand.vmem [shape: f32[1,128], index: 4, kind: input, shape index: {}]
  %s5 = inlined_call_operand.vmem [shape: f32[1,128], index: 5, kind: input, shape index: {}]
  %s6 = inlined_call_operand.vmem [shape: f32[40,1], index: 6, kind: input, shape index: {}]
  %s7 = inlined_call_operand.<no memory space> [shape: f32[1,1], index: 7, kind: input, shape index: {}]
  %s8 = inlined_call_operand.vmem [shape: f32[128,8], index: 8, kind: input, shape index: {}]
  %s9 = inlined_call_operand.vmem [shape: f32[8,128], index: 9, kind: input, shape index: {}]
  %s10 = inlined_call_operand.vmem [shape: f32[128,400], index: 10, kind: input, shape index: {}]
  %s11 = inlined_call_operand.vmem [shape: f32[1,400], index: 11, kind: input, shape index: {}]
  %s12 = inlined_call_operand.vmem [shape: f32[400,24], index: 12, kind: input, shape index: {}]
  %s13 = inlined_call_operand.vmem [shape: f32[1,24], index: 13, kind: input, shape index: {}]
  %s14 = inlined_call_operand.vmem [shape: f32[1,1,24], index: 14, kind: output, shape index: {0}]
  %s15 = inlined_call_operand.vmem [shape: f32[1,1,128], index: 15, kind: output, shape index: {1}]
  %16 = xla_tuple %s14, %s15
  %s17 = sld [smem:[#allocation0]]
  $region74: #{gcn_net_forward.1} parent=0
    _
  %s19 = ssub.s32 1, %s17
  %s20 = scalar_select 0, %s19, %s17
  %21 = sst [smem:[#allocation2]] %s7
  // Predicated region
  $region2: #{gcn_net_forward.1} parent=0 // pred_check
    _
  $region3: #{gcn_net_forward.1} parent=0 // pred_check_branch
    %23 = sbr.rel (0) target = $region5
  $region4: #{gcn_net_forward.1} parent=0 // pred_region
    _
  $region5: #{gcn_net_forward.1} parent=0 // pred_fallthru
    _
  // Predicated region
  $region6: #{gcn_net_forward.1} parent=0 // pred_check
    _
  $region7: #{gcn_net_forward.1} parent=0 // pred_check_branch
    %25 = sbr.rel (0) target = $region9
  $region8: #{gcn_net_forward.1} parent=0 // pred_region
    _
  $region9: #{gcn_net_forward.1} parent=0 // pred_fallthru
    _
  // Predicated region
  $region10: #{gcn_net_forward.1} parent=0 // pred_check
    _
  $region11: #{gcn_net_forward.1} parent=0 // pred_check_branch
    %27 = sbr.rel (0) target = $region13
  $region12: #{gcn_net_forward.1} parent=0 // pred_region
    _
  $region13: #{gcn_net_forward.1} parent=0 // pred_fallthru
    _
  // Predicated region
  $region14: #{gcn_net_forward.1} parent=0 // pred_check
    _
  $region15: #{gcn_net_forward.1} parent=0 // pred_check_branch
    %29 = sbr.rel (0) target = $region17
  $region16: #{gcn_net_forward.1} parent=0 // pred_region
    _
  $region17: #{gcn_net_forward.1} parent=0 // pred_fallthru
    _
  // Predicated region
  $region18: #{gcn_net_forward.1} parent=0 // pred_check
    _
  $region19: #{gcn_net_forward.1} parent=0 // pred_check_branch
    %31 = sbr.rel (0) target = $region21
  $region20: #{gcn_net_forward.1} parent=0 // pred_region
    _
  $region21: #{gcn_net_forward.1} parent=0 // pred_fallthru
    _
  // Predicated region
  $region22: #{gcn_net_forward.1} parent=0 // pred_check
    _
  $region23: #{gcn_net_forward.1} parent=0 // pred_check_branch
    %33 = sbr.rel (0) target = $region25
  $region24: #{gcn_net_forward.1} parent=0 // pred_region
    _
  $region25: #{gcn_net_forward.1} parent=0 // pred_fallthru
    _
  // Predicated region
  $region26: #{gcn_net_forward.1} parent=0 // pred_check
    _
  $region27: #{gcn_net_forward.1} parent=0 // pred_check_branch
    %35 = sbr.rel (0) target = $region29
  $region28: #{gcn_net_forward.1} parent=0 // pred_region
    _
  $region29: #{gcn_net_forward.1} parent=0 // pred_fallthru
    _
  // Predicated region
  $region30: #{gcn_net_forward.1} parent=0 // pred_check
    _
  $region31: #{gcn_net_forward.1} parent=0 // pred_check_branch
    %37 = sbr.rel (0) target = $region33
  $region32: #{gcn_net_forward.1} parent=0 // pred_region
    _
  $region33: #{gcn_net_forward.1} parent=0 // pred_fallthru
    _
  // Predicated region
  $region34: #{gcn_net_forward.1} parent=0 // pred_check
    _
  $region35: #{gcn_net_forward.1} parent=0 // pred_check_branch
    %39 = sbr.rel (0) target = $region37
  $region36: #{gcn_net_forward.1} parent=0 // pred_region
    _
  $region37: #{gcn_net_forward.1} parent=0 // pred_fallthru
    _
  // Predicated region
  $region38: #{gcn_net_forward.1} parent=0 // pred_check
    _
  $region39: #{gcn_net_forward.1} parent=0 // pred_check_branch
    %41 = sbr.rel (0) target = $region41
  $region40: #{gcn_net_forward.1} parent=0 // pred_region
    _
  $region41: #{gcn_net_forward.1} parent=0 // pred_fallthru
    _
  // Predicated region
  $region42: #{gcn_net_forward.1} parent=0 // pred_check
    _
  $region43: #{gcn_net_forward.1} parent=0 // pred_check_branch
    %43 = sbr.rel (0) target = $region45
  $region44: #{gcn_net_forward.1} parent=0 // pred_region
    _
  $region45: #{gcn_net_forward.1} parent=0 // pred_fallthru
    _
  // Predicated region
  $region46: #{gcn_net_forward.1} parent=0 // pred_check
    _
  $region47: #{gcn_net_forward.1} parent=0 // pred_check_branch
    %45 = sbr.rel (0) target = $region49
  $region48: #{gcn_net_forward.1} parent=0 // pred_region
    _
  $region49: #{gcn_net_forward.1} parent=0 // pred_fallthru
    _
  // Predicated region
  $region50: #{gcn_net_forward.1} parent=0 // pred_check
    _
  $region51: #{gcn_net_forward.1} parent=0 // pred_check_branch
    %47 = sbr.rel (0) target = $region53
  $region52: #{gcn_net_forward.1} parent=0 // pred_region
    _
  $region53: #{gcn_net_forward.1} parent=0 // pred_fallthru
    _
  // Predicated region
  $region54: #{gcn_net_forward.1} parent=0 // pred_check
    _
  $region55: #{gcn_net_forward.1} parent=0 // pred_check_branch
    %49 = sbr.rel (0) target = $region57
  $region56: #{gcn_net_forward.1} parent=0 // pred_region
    _
  $region57: #{gcn_net_forward.1} parent=0 // pred_fallthru
    _
  %v50 = vld [vmem:[%s0] sm:$0xff]
  %v51 = vld [vmem:[%s0 + $0x8] sm:$0xff]
  %v52 = vld [vmem:[%s0 + $0x10] sm:$0xff]
  %v53 = vld [vmem:[%s0 + $0x18] sm:$0xff]
  %v54 = vld [vmem:[%s0 + $0x20] sm:$0xff]
  %v55 = vld [vmem:[%s0 + $0x28] sm:$0xff]
  %v56 = vld [vmem:[%s0 + $0x30] sm:$0xff]
  %v57 = vld [vmem:[%s0 + $0x38] sm:$0xff]
  %v58 = vld [vmem:[%s0 + $0x40] sm:$0xff]
  %v59 = vld [vmem:[%s0 + $0x48] sm:$0xff]
  %v60 = vld [vmem:[%s0 + $0x50] sm:$0xff]
  %v61 = vld [vmem:[%s0 + $0x58] sm:$0xff]
  %v62 = vld [vmem:[%s0 + $0x60] sm:$0xff]
  %v63 = vld [vmem:[%s0 + $0x68] sm:$0xff]
  %v64 = vld [vmem:[%s0 + $0x70] sm:$0xff]
  %v65 = vld [vmem:[%s0 + $0x78] sm:$0xff]
  %v66 = vld [vmem:[%s1] sm:$0xf]
  %v67 = vld [vmem:[%s2] sm:$0xff]
  %v68 = vld [vmem:[%s2 + $0x8] sm:$0xff]
  %v69 = vld [vmem:[%s2 + $0x10] sm:$0xff]
  %v70 = vld [vmem:[%s2 + $0x18] sm:$0xff]
  %v71 = vld [vmem:[%s2 + $0x20] sm:$0xff]
  %vm72 = vcmask 31744
  %v74 = vsel %vm72, %v67, 0
  %v77 = vsel %vm72, %v68, 0
  %v80 = vsel %vm72, %v69, 0
  %v83 = vsel %vm72, %v70, 0
  %v86 = vsel %vm72, %v71, 0
  %vm88 = vcmask 1043456
  %v90 = vsel %vm88, %v66, 0
  %92 = vmatpush.msra.mxu0 0.0
  %93 = vmatpush.msra.mxu0 0.0
  %94 = vmatpush.msra.mxu0 0.0
  %95 = vmatpush.msra.mxu0 0.0
  %96 = vmatpush.msra.mxu0 0.0
  %97 = vmatpush.msra.mxu0 0.0
  %98 = vmatpush.msra.mxu0 0.0
  %99 = vmatpush.msra.mxu0 0.0
  %100 = vmatpush.msra.mxu0 0.0
  %101 = vmatpush.msra.mxu0 0.0
  %102 = vmatpush.msra.mxu0 0.0
  %103 = vmatpush.msra.mxu0 0.0
  %104 = vmatpush.msra.mxu0 0.0
  %105 = vmatpush.msra.mxu0 0.0
  %106 = vmatpush.msra.mxu0 0.0
  %107 = vmatpush.msra.mxu0 %v90
  %108 = vmatmul.f32.gmra.mxu0 %v74
  %v109 = vpop.f32.mrf.mxu0
  %v110 = vadd.f32 0.0, %v109
  %111 = vmatmul.f32.gmra.mxu0 %v77
  %v112 = vpop.f32.mrf.mxu0
  %v113 = vadd.f32 0.0, %v112
  %114 = vmatmul.f32.gmra.mxu0 %v80
  %v115 = vpop.f32.mrf.mxu0
  %v116 = vadd.f32 0.0, %v115
  %117 = vmatmul.f32.gmra.mxu0 %v83
  %v118 = vpop.f32.mrf.mxu0
  %v119 = vadd.f32 0.0, %v118
  %120 = vmatmul.f32.gmra.mxu0 %v86
  %v121 = vpop.f32.mrf.mxu0
  %v122 = vadd.f32 0.0, %v121
  %123 = vdwg.mxu0
  %v124 = vld [vmem:[%s3] sm:$0xff]
  %v125 = vld [vmem:[%s3 + $0x8] sm:$0xff]
  %v126 = vld [vmem:[%s3 + $0x10] sm:$0xff]
  %v127 = vld [vmem:[%s3 + $0x18] sm:$0xff]
  %v128 = vld [vmem:[%s3 + $0x20] sm:$0xff]
  %130 = vset.pattern.permute.xlu0 0
  %131 = vperm.xlu0 %130, %v124
  %v132 = vpop.permute.xlu0 %131
  %135 = vset.pattern.permute.xlu0 0
  %136 = vperm.xlu0 %135, %v125
  %v137 = vpop.permute.xlu0 %136
  %140 = vset.pattern.permute.xlu0 0
  %141 = vperm.xlu0 %140, %v126
  %v142 = vpop.permute.xlu0 %141
  %145 = vset.pattern.permute.xlu0 0
  %146 = vperm.xlu0 %145, %v127
  %v147 = vpop.permute.xlu0 %146
  %150 = vset.pattern.permute.xlu0 0
  %151 = vperm.xlu0 %150, %v128
  %v152 = vpop.permute.xlu0 %151
  %154 = vmatpush.msra.mxu0 %v65
  %155 = vmatpush.msra.mxu0 %v64
  %156 = vmatpush.msra.mxu0 %v63
  %157 = vmatpush.msra.mxu0 %v62
  %158 = vmatpush.msra.mxu0 %v61
  %159 = vmatpush.msra.mxu0 %v60
  %160 = vmatpush.msra.mxu0 %v59
  %161 = vmatpush.msra.mxu0 %v58
  %162 = vmatpush.msra.mxu0 %v57
  %163 = vmatpush.msra.mxu0 %v56
  %164 = vmatpush.msra.mxu0 %v55
  %165 = vmatpush.msra.mxu0 %v54
  %166 = vmatpush.msra.mxu0 %v53
  %167 = vmatpush.msra.mxu0 %v52
  %168 = vmatpush.msra.mxu0 %v51
  %169 = vmatpush.msra.mxu0 %v50
  %170 = vmatmul.f32.gmra.mxu0 %v110
  %v171 = vpop.f32.mrf.mxu0
  %v172 = vadd.f32 %v132, %v171
  %173 = vmatmul.f32.gmra.mxu0 %v113
  %v174 = vpop.f32.mrf.mxu0
  %v175 = vadd.f32 %v137, %v174
  %176 = vmatmul.f32.gmra.mxu0 %v116
  %v177 = vpop.f32.mrf.mxu0
  %v178 = vadd.f32 %v142, %v177
  %179 = vmatmul.f32.gmra.mxu0 %v119
  %v180 = vpop.f32.mrf.mxu0
  %v181 = vadd.f32 %v147, %v180
  %182 = vmatmul.f32.gmra.mxu0 %v122
  %v183 = vpop.f32.mrf.mxu0
  %v184 = vadd.f32 %v152, %v183
  %185 = vdwg.mxu0
  %vm186 = vcmp.ge.f32.partialorder %v172, 0.0
  %vm187 = vcmp.ge.f32.partialorder %v175, 0.0
  %vm188 = vcmp.ge.f32.partialorder %v178, 0.0
  %vm189 = vcmp.ge.f32.partialorder %v181, 0.0
  %vm190 = vcmp.ge.f32.partialorder %v184, 0.0
  %v191 = vmul.f32 %v172, 0.01
  %v192 = vmul.f32 %v175, 0.01
  %v193 = vmul.f32 %v178, 0.01
  %v194 = vmul.f32 %v181, 0.01
  %v195 = vmul.f32 %v184, 0.01
  %v196 = vsel %vm186, %v172, %v191
  %v197 = vsel %vm187, %v175, %v192
  %v198 = vsel %vm188, %v178, %v193
  %v199 = vsel %vm189, %v181, %v194
  %v200 = vsel %vm190, %v184, %v195
  %v201 = vld [vmem:[%s4] sm:$0x1]
  %v203 = vperm.slane %v201, 0
  %v205 = vmul.f32 %v196, %v203
  %v206 = vmul.f32 %v197, %v203
  %v207 = vmul.f32 %v198, %v203
  %v208 = vmul.f32 %v199, %v203
  %v209 = vmul.f32 %v200, %v203
  %v210 = vld [vmem:[%s5] sm:$0x1]
  %v212 = vperm.slane %v210, 0
  %v214 = vadd.f32 %v205, %v212
  %v215 = vadd.f32 %v206, %v212
  %v216 = vadd.f32 %v207, %v212
  %v217 = vadd.f32 %v208, %v212
  %v218 = vadd.f32 %v209, %v212
  %219 = vmatpush.msra.mxu0 %v65
  %220 = vmatpush.msra.mxu0 %v64
  %221 = vmatpush.msra.mxu0 %v63
  %222 = vmatpush.msra.mxu0 %v62
  %223 = vmatpush.msra.mxu0 %v61
  %224 = vmatpush.msra.mxu0 %v60
  %225 = vmatpush.msra.mxu0 %v59
  %226 = vmatpush.msra.mxu0 %v58
  %227 = vmatpush.msra.mxu0 %v57
  %228 = vmatpush.msra.mxu0 %v56
  %229 = vmatpush.msra.mxu0 %v55
  %230 = vmatpush.msra.mxu0 %v54
  %231 = vmatpush.msra.mxu0 %v53
  %232 = vmatpush.msra.mxu0 %v52
  %233 = vmatpush.msra.mxu0 %v51
  %234 = vmatpush.msra.mxu0 %v50
  %235 = vmatmul.f32.gmra.mxu0 %v214
  %v236 = vpop.f32.mrf.mxu0
  %v237 = vadd.f32 0.0, %v236
  %238 = vmatmul.f32.gmra.mxu0 %v215
  %v239 = vpop.f32.mrf.mxu0
  %v240 = vadd.f32 0.0, %v239
  %241 = vmatmul.f32.gmra.mxu0 %v216
  %v242 = vpop.f32.mrf.mxu0
  %v243 = vadd.f32 0.0, %v242
  %244 = vmatmul.f32.gmra.mxu0 %v217
  %v245 = vpop.f32.mrf.mxu0
  %v246 = vadd.f32 0.0, %v245
  %247 = vmatmul.f32.gmra.mxu0 %v218
  %v248 = vpop.f32.mrf.mxu0
  %v249 = vadd.f32 0.0, %v248
  %250 = vdwg.mxu0
  %v251 = vld [vmem:[%s6] sm:$0xff]
  %v252 = vld [vmem:[%s6 + $0x8] sm:$0xff]
  %v253 = vld [vmem:[%s6 + $0x10] sm:$0xff]
  %v254 = vld [vmem:[%s6 + $0x18] sm:$0xff]
  %v255 = vld [vmem:[%s6 + $0x20] sm:$0xff]
  %257 = vset.pattern.permute.xlu0 0
  %258 = vperm.xlu0 %257, %v251
  %v259 = vpop.permute.xlu0 %258
  %262 = vset.pattern.permute.xlu0 0
  %263 = vperm.xlu0 %262, %v252
  %v264 = vpop.permute.xlu0 %263
  %267 = vset.pattern.permute.xlu0 0
  %268 = vperm.xlu0 %267, %v253
  %v269 = vpop.permute.xlu0 %268
  %272 = vset.pattern.permute.xlu0 0
  %273 = vperm.xlu0 %272, %v254
  %v274 = vpop.permute.xlu0 %273
  %277 = vset.pattern.permute.xlu0 0
  %278 = vperm.xlu0 %277, %v255
  %v279 = vpop.permute.xlu0 %278
  %v281 = vmul.f32 %v259, %v237
  %v282 = vmul.f32 %v264, %v240
  %v283 = vmul.f32 %v269, %v243
  %v284 = vmul.f32 %v274, %v246
  %v285 = vmul.f32 %v279, %v249
  %v286 = vadd.f32 %v281, %v282
  %v287 = vadd.f32 %v286, %v283
  %v288 = vadd.f32 %v287, %v284
  %v289 = vadd.f32 %v288, %v285
  %v290 = vrot.slane %v289, 4
  %v291 = vadd.f32 %v289, %v290
  %v292 = vrot.slane %v291, 2
  %v293 = vadd.f32 %v291, %v292
  %v294 = vrot.slane %v293, 1
  %v295 = vadd.f32 %v293, %v294
  %s296 = sld [smem:[#allocation2]]
  %v297 = vstv %s296
  %v298 = vadd.f32 %v295, %v297
  %vm299 = vcmp.ge.f32.partialorder %v298, 0.0
  %v300 = vmul.f32 %v298, 0.01
  %v301 = vsel %vm299, %v298, %v300
  %302 = vst [vmem:[%s15] sm:$0x1] %v301
  %v303 = vld [vmem:[%s8] sm:$0xff]
  %v304 = vld [vmem:[%s8 + $0x8] sm:$0xff]
  %v305 = vld [vmem:[%s8 + $0x10] sm:$0xff]
  %v306 = vld [vmem:[%s8 + $0x18] sm:$0xff]
  %v307 = vld [vmem:[%s8 + $0x20] sm:$0xff]
  %v308 = vld [vmem:[%s8 + $0x28] sm:$0xff]
  %v309 = vld [vmem:[%s8 + $0x30] sm:$0xff]
  %v310 = vld [vmem:[%s8 + $0x38] sm:$0xff]
  %v311 = vld [vmem:[%s8 + $0x40] sm:$0xff]
  %v312 = vld [vmem:[%s8 + $0x48] sm:$0xff]
  %v313 = vld [vmem:[%s8 + $0x50] sm:$0xff]
  %v314 = vld [vmem:[%s8 + $0x58] sm:$0xff]
  %v315 = vld [vmem:[%s8 + $0x60] sm:$0xff]
  %v316 = vld [vmem:[%s8 + $0x68] sm:$0xff]
  %v317 = vld [vmem:[%s8 + $0x70] sm:$0xff]
  %v318 = vld [vmem:[%s8 + $0x78] sm:$0xff]
  %v319 = vld [vmem:[%s9] sm:$0xff]
  %320 = vmatpush.msra.mxu0 %v318
  %321 = vmatpush.msra.mxu0 %v317
  %322 = vmatpush.msra.mxu0 %v316
  %323 = vmatpush.msra.mxu0 %v315
  %324 = vmatpush.msra.mxu0 %v314
  %325 = vmatpush.msra.mxu0 %v313
  %326 = vmatpush.msra.mxu0 %v312
  %327 = vmatpush.msra.mxu0 %v311
  %328 = vmatpush.msra.mxu0 %v310
  %329 = vmatpush.msra.mxu0 %v309
  %330 = vmatpush.msra.mxu0 %v308
  %331 = vmatpush.msra.mxu0 %v307
  %332 = vmatpush.msra.mxu0 %v306
  %333 = vmatpush.msra.mxu0 %v305
  %334 = vmatpush.msra.mxu0 %v304
  %335 = vmatpush.msra.mxu0 %v303
  %336 = vmatmul.f32.gmra.mxu0 %v301
  %v337 = vpop.f32.mrf.mxu0
  %v338 = vadd.f32 0.0, %v337
  %339 = vdwg.mxu0
  %v340 = vmul.f32 %v338, 0.0625
  %vm341 = vcmask 64512
  %v343 = vsel %vm341, %v340, 0
  %345 = vmatpush.msra.mxu0 0.0
  %346 = vmatpush.msra.mxu0 0.0
  %347 = vmatpush.msra.mxu0 0.0
  %348 = vmatpush.msra.mxu0 0.0
  %349 = vmatpush.msra.mxu0 0.0
  %350 = vmatpush.msra.mxu0 0.0
  %351 = vmatpush.msra.mxu0 0.0
  %352 = vmatpush.msra.mxu0 0.0
  %353 = vmatpush.msra.mxu0 0.0
  %354 = vmatpush.msra.mxu0 0.0
  %355 = vmatpush.msra.mxu0 0.0
  %356 = vmatpush.msra.mxu0 0.0
  %357 = vmatpush.msra.mxu0 0.0
  %358 = vmatpush.msra.mxu0 0.0
  %359 = vmatpush.msra.mxu0 0.0
  %360 = vmatpush.msra.mxu0 %v319
  %361 = vmatmul.f32.gmra.mxu0 %v343
  %v362 = vpop.f32.mrf.mxu0
  %v363 = vadd.f32 0.0, %v362
  %364 = vdwg.mxu0
  %v365 = vsub.f32 %v301, %v363
  %v366 = vmul.f32 %v365, %v365
  %367 = vmatpush.msra.mxu0 %v318
  %368 = vmatpush.msra.mxu0 %v317
  %369 = vmatpush.msra.mxu0 %v316
  %370 = vmatpush.msra.mxu0 %v315
  %371 = vmatpush.msra.mxu0 %v314
  %372 = vmatpush.msra.mxu0 %v313
  %373 = vmatpush.msra.mxu0 %v312
  %374 = vmatpush.msra.mxu0 %v311
  %375 = vmatpush.msra.mxu0 %v310
  %376 = vmatpush.msra.mxu0 %v309
  %377 = vmatpush.msra.mxu0 %v308
  %378 = vmatpush.msra.mxu0 %v307
  %379 = vmatpush.msra.mxu0 %v306
  %380 = vmatpush.msra.mxu0 %v305
  %381 = vmatpush.msra.mxu0 %v304
  %382 = vmatpush.msra.mxu0 %v303
  %383 = vmatmul.f32.gmra.mxu0 %v366
  %v384 = vpop.f32.mrf.mxu0
  %v385 = vadd.f32 0.0, %v384
  %386 = vdwg.mxu0
  %v387 = vmul.f32 %v385, 0.06666667
  %v389 = vsel %vm341, %v387, 0
  %391 = vmatpush.msra.mxu0 0.0
  %392 = vmatpush.msra.mxu0 0.0
  %393 = vmatpush.msra.mxu0 0.0
  %394 = vmatpush.msra.mxu0 0.0
  %395 = vmatpush.msra.mxu0 0.0
  %396 = vmatpush.msra.mxu0 0.0
  %397 = vmatpush.msra.mxu0 0.0
  %398 = vmatpush.msra.mxu0 0.0
  %399 = vmatpush.msra.mxu0 0.0
  %400 = vmatpush.msra.mxu0 0.0
  %401 = vmatpush.msra.mxu0 0.0
  %402 = vmatpush.msra.mxu0 0.0
  %403 = vmatpush.msra.mxu0 0.0
  %404 = vmatpush.msra.mxu0 0.0
  %405 = vmatpush.msra.mxu0 0.0
  %406 = vmatpush.msra.mxu0 %v319
  %407 = vmatmul.f32.gmra.mxu0 %v389
  %v408 = vpop.f32.mrf.mxu0
  %v409 = vadd.f32 1e-10, %v408
  %410 = vdwg.mxu0
  %v411 = vrcp.pop %v409
  %v412 = vmul.f32 %v409, %v411
  %v413 = vsub.f32 1.0, %v412
  %v414 = vmul.f32 %v411, %v413
  %v415 = vadd.f32 %v411, %v414
  %vm416 = vweird.f32 %v409
  %vm417 = vweird.f32 %v411
  %vm418 = vmor %vm416, %vm417
  %v419 = vsel %vm418, %v411, %v415
  %v420 = vand.u32 2147483647, %v409
  %vm421 = vcmp.eq.f32.partialorder %v420, 8.507059e+37
  %v422 = vand.u32 %v409, 2147483648
  %v423 = vor.u32 1.1754944e-38, %v422
  %v424 = vsel %vm421, %v423, %v419
  %v425 = vmul.f32 %v365, %v424
  %v426 = vld [vmem:[%s10] sm:$0xff]
  %v427 = vld [vmem:[%s10 + $0x8] sm:$0xff]
  %v428 = vld [vmem:[%s10 + $0x10] sm:$0xff]
  %v429 = vld [vmem:[%s10 + $0x18] sm:$0xff]
  %v430 = vld [vmem:[%s10 + $0x20] sm:$0xff]
  %v431 = vld [vmem:[%s10 + $0x28] sm:$0xff]
  %v432 = vld [vmem:[%s10 + $0x30] sm:$0xff]
  %v433 = vld [vmem:[%s10 + $0x38] sm:$0xff]
  %v434 = vld [vmem:[%s10 + $0x40] sm:$0xff]
  %v435 = vld [vmem:[%s10 + $0x48] sm:$0xff]
  %v436 = vld [vmem:[%s10 + $0x50] sm:$0xff]
  %v437 = vld [vmem:[%s10 + $0x58] sm:$0xff]
  %v438 = vld [vmem:[%s10 + $0x60] sm:$0xff]
  %v439 = vld [vmem:[%s10 + $0x68] sm:$0xff]
  %v440 = vld [vmem:[%s10 + $0x70] sm:$0xff]
  %v441 = vld [vmem:[%s10 + $0x78] sm:$0xff]
  %v442 = vld [vmem:[%s10 + $0x80] sm:$0xff]
  %v443 = vld [vmem:[%s10 + $0x88] sm:$0xff]
  %v444 = vld [vmem:[%s10 + $0x90] sm:$0xff]
  %v445 = vld [vmem:[%s10 + $0x98] sm:$0xff]
  %v446 = vld [vmem:[%s10 + $0xa0] sm:$0xff]
  %v447 = vld [vmem:[%s10 + $0xa8] sm:$0xff]
  %v448 = vld [vmem:[%s10 + $0xb0] sm:$0xff]
  %v449 = vld [vmem:[%s10 + $0xb8] sm:$0xff]
  %v450 = vld [vmem:[%s10 + $0xc0] sm:$0xff]
  %v451 = vld [vmem:[%s10 + $0xc8] sm:$0xff]
  %v452 = vld [vmem:[%s10 + $0xd0] sm:$0xff]
  %v453 = vld [vmem:[%s10 + $0xd8] sm:$0xff]
  %v454 = vld [vmem:[%s10 + $0xe0] sm:$0xff]
  %v455 = vld [vmem:[%s10 + $0xe8] sm:$0xff]
  %v456 = vld [vmem:[%s10 + $0xf0] sm:$0xff]
  %v457 = vld [vmem:[%s10 + $0xf8] sm:$0xff]
  %v458 = vld [vmem:[%s10 + $0x100] sm:$0xff]
  %v459 = vld [vmem:[%s10 + $0x108] sm:$0xff]
  %v460 = vld [vmem:[%s10 + $0x110] sm:$0xff]
  %v461 = vld [vmem:[%s10 + $0x118] sm:$0xff]
  %v462 = vld [vmem:[%s10 + $0x120] sm:$0xff]
  %v463 = vld [vmem:[%s10 + $0x128] sm:$0xff]
  %v464 = vld [vmem:[%s10 + $0x130] sm:$0xff]
  %v465 = vld [vmem:[%s10 + $0x138] sm:$0xff]
  %v466 = vld [vmem:[%s10 + $0x140] sm:$0xff]
  %v467 = vld [vmem:[%s10 + $0x148] sm:$0xff]
  %v468 = vld [vmem:[%s10 + $0x150] sm:$0xff]
  %v469 = vld [vmem:[%s10 + $0x158] sm:$0xff]
  %v470 = vld [vmem:[%s10 + $0x160] sm:$0xff]
  %v471 = vld [vmem:[%s10 + $0x168] sm:$0xff]
  %v472 = vld [vmem:[%s10 + $0x170] sm:$0xff]
  %v473 = vld [vmem:[%s10 + $0x178] sm:$0xff]
  %v474 = vld [vmem:[%s10 + $0x180] sm:$0xff]
  %v475 = vld [vmem:[%s10 + $0x188] sm:$0xff]
  %v476 = vld [vmem:[%s10 + $0x190] sm:$0xff]
  %v477 = vld [vmem:[%s10 + $0x198] sm:$0xff]
  %v478 = vld [vmem:[%s10 + $0x1a0] sm:$0xff]
  %v479 = vld [vmem:[%s10 + $0x1a8] sm:$0xff]
  %v480 = vld [vmem:[%s10 + $0x1b0] sm:$0xff]
  %v481 = vld [vmem:[%s10 + $0x1b8] sm:$0xff]
  %v482 = vld [vmem:[%s10 + $0x1c0] sm:$0xff]
  %v483 = vld [vmem:[%s10 + $0x1c8] sm:$0xff]
  %v484 = vld [vmem:[%s10 + $0x1d0] sm:$0xff]
  %v485 = vld [vmem:[%s10 + $0x1d8] sm:$0xff]
  %v486 = vld [vmem:[%s10 + $0x1e0] sm:$0xff]
  %v487 = vld [vmem:[%s10 + $0x1e8] sm:$0xff]
  %v488 = vld [vmem:[%s10 + $0x1f0] sm:$0xff]
  %v489 = vld [vmem:[%s10 + $0x1f8] sm:$0xff]
  %v490 = vld [vmem:[%s11] sm:$0xf]
  %v492 = vperm.slane %v490, 0
  %v493 = vperm.slane %v490, 1
  %v494 = vperm.slane %v490, 2
  %v495 = vperm.slane %v490, 3
  %500 = vmatpush.msra.mxu0 %v486
  %501 = vmatpush.msra.mxu0 %v482
  %502 = vmatpush.msra.mxu0 %v478
  %503 = vmatpush.msra.mxu0 %v474
  %504 = vmatpush.msra.mxu0 %v470
  %505 = vmatpush.msra.mxu0 %v466
  %506 = vmatpush.msra.mxu0 %v462
  %507 = vmatpush.msra.mxu0 %v458
  %508 = vmatpush.msra.mxu0 %v454
  %509 = vmatpush.msra.mxu0 %v450
  %510 = vmatpush.msra.mxu0 %v446
  %511 = vmatpush.msra.mxu0 %v442
  %512 = vmatpush.msra.mxu0 %v438
  %513 = vmatpush.msra.mxu0 %v434
  %514 = vmatpush.msra.mxu0 %v430
  %515 = vmatpush.msra.mxu0 %v426
  %516 = vmatmul.f32.gmra.mxu0 %v425
  %v517 = vpop.f32.mrf.mxu0
  %v518 = vadd.f32 %v492, %v517
  %519 = vdwg.mxu0
  %520 = vmatpush.msra.mxu0 %v487
  %521 = vmatpush.msra.mxu0 %v483
  %522 = vmatpush.msra.mxu0 %v479
  %523 = vmatpush.msra.mxu0 %v475
  %524 = vmatpush.msra.mxu0 %v471
  %525 = vmatpush.msra.mxu0 %v467
  %526 = vmatpush.msra.mxu0 %v463
  %527 = vmatpush.msra.mxu0 %v459
  %528 = vmatpush.msra.mxu0 %v455
  %529 = vmatpush.msra.mxu0 %v451
  %530 = vmatpush.msra.mxu0 %v447
  %531 = vmatpush.msra.mxu0 %v443
  %532 = vmatpush.msra.mxu0 %v439
  %533 = vmatpush.msra.mxu0 %v435
  %534 = vmatpush.msra.mxu0 %v431
  %535 = vmatpush.msra.mxu0 %v427
  %536 = vmatmul.f32.gmra.mxu0 %v425
  %v537 = vpop.f32.mrf.mxu0
  %v538 = vadd.f32 %v493, %v537
  %539 = vdwg.mxu0
  %540 = vmatpush.msra.mxu0 %v488
  %541 = vmatpush.msra.mxu0 %v484
  %542 = vmatpush.msra.mxu0 %v480
  %543 = vmatpush.msra.mxu0 %v476
  %544 = vmatpush.msra.mxu0 %v472
  %545 = vmatpush.msra.mxu0 %v468
  %546 = vmatpush.msra.mxu0 %v464
  %547 = vmatpush.msra.mxu0 %v460
  %548 = vmatpush.msra.mxu0 %v456
  %549 = vmatpush.msra.mxu0 %v452
  %550 = vmatpush.msra.mxu0 %v448
  %551 = vmatpush.msra.mxu0 %v444
  %552 = vmatpush.msra.mxu0 %v440
  %553 = vmatpush.msra.mxu0 %v436
  %554 = vmatpush.msra.mxu0 %v432
  %555 = vmatpush.msra.mxu0 %v428
  %556 = vmatmul.f32.gmra.mxu0 %v425
  %v557 = vpop.f32.mrf.mxu0
  %v558 = vadd.f32 %v494, %v557
  %559 = vdwg.mxu0
  %560 = vmatpush.msra.mxu0 %v489
  %561 = vmatpush.msra.mxu0 %v485
  %562 = vmatpush.msra.mxu0 %v481
  %563 = vmatpush.msra.mxu0 %v477
  %564 = vmatpush.msra.mxu0 %v473
  %565 = vmatpush.msra.mxu0 %v469
  %566 = vmatpush.msra.mxu0 %v465
  %567 = vmatpush.msra.mxu0 %v461
  %568 = vmatpush.msra.mxu0 %v457
  %569 = vmatpush.msra.mxu0 %v453
  %570 = vmatpush.msra.mxu0 %v449
  %571 = vmatpush.msra.mxu0 %v445
  %572 = vmatpush.msra.mxu0 %v441
  %573 = vmatpush.msra.mxu0 %v437
  %574 = vmatpush.msra.mxu0 %v433
  %575 = vmatpush.msra.mxu0 %v429
  %576 = vmatmul.f32.gmra.mxu0 %v425
  %v577 = vpop.f32.mrf.mxu0
  %v578 = vadd.f32 %v495, %v577
  %579 = vdwg.mxu0
  %vm580 = vcmp.ge.f32.partialorder %v518, 0.0
  %vm581 = vcmp.ge.f32.partialorder %v538, 0.0
  %vm582 = vcmp.ge.f32.partialorder %v558, 0.0
  %vm583 = vcmp.ge.f32.partialorder %v578, 0.0
  %v584 = vmul.f32 %v518, 0.01
  %v585 = vmul.f32 %v538, 0.01
  %v586 = vmul.f32 %v558, 0.01
  %v587 = vmul.f32 %v578, 0.01
  %v588 = vsel %vm580, %v518, %v584
  %v589 = vsel %vm581, %v538, %v585
  %v590 = vsel %vm582, %v558, %v586
  %v591 = vsel %vm583, %v578, %v587
  %v592 = vld [vmem:[%s12] sm:$0xff]
  %v593 = vld [vmem:[%s12 + $0x8] sm:$0xff]
  %v594 = vld [vmem:[%s12 + $0x10] sm:$0xff]
  %v595 = vld [vmem:[%s12 + $0x18] sm:$0xff]
  %v596 = vld [vmem:[%s12 + $0x20] sm:$0xff]
  %v597 = vld [vmem:[%s12 + $0x28] sm:$0xff]
  %v598 = vld [vmem:[%s12 + $0x30] sm:$0xff]
  %v599 = vld [vmem:[%s12 + $0x38] sm:$0xff]
  %v600 = vld [vmem:[%s12 + $0x40] sm:$0xff]
  %v601 = vld [vmem:[%s12 + $0x48] sm:$0xff]
  %v602 = vld [vmem:[%s12 + $0x50] sm:$0xff]
  %v603 = vld [vmem:[%s12 + $0x58] sm:$0xff]
  %v604 = vld [vmem:[%s12 + $0x60] sm:$0xff]
  %v605 = vld [vmem:[%s12 + $0x68] sm:$0xff]
  %v606 = vld [vmem:[%s12 + $0x70] sm:$0xff]
  %v607 = vld [vmem:[%s12 + $0x78] sm:$0xff]
  %v608 = vld [vmem:[%s12 + $0x80] sm:$0xff]
  %v609 = vld [vmem:[%s12 + $0x88] sm:$0xff]
  %v610 = vld [vmem:[%s12 + $0x90] sm:$0xff]
  %v611 = vld [vmem:[%s12 + $0x98] sm:$0xff]
  %v612 = vld [vmem:[%s12 + $0xa0] sm:$0xff]
  %v613 = vld [vmem:[%s12 + $0xa8] sm:$0xff]
  %v614 = vld [vmem:[%s12 + $0xb0] sm:$0xff]
  %v615 = vld [vmem:[%s12 + $0xb8] sm:$0xff]
  %v616 = vld [vmem:[%s12 + $0xc0] sm:$0xff]
  %v617 = vld [vmem:[%s12 + $0xc8] sm:$0xff]
  %v618 = vld [vmem:[%s12 + $0xd0] sm:$0xff]
  %v619 = vld [vmem:[%s12 + $0xd8] sm:$0xff]
  %v620 = vld [vmem:[%s12 + $0xe0] sm:$0xff]
  %v621 = vld [vmem:[%s12 + $0xe8] sm:$0xff]
  %v622 = vld [vmem:[%s12 + $0xf0] sm:$0xff]
  %v623 = vld [vmem:[%s12 + $0xf8] sm:$0xff]
  %v624 = vld [vmem:[%s12 + $0x100] sm:$0xff]
  %v625 = vld [vmem:[%s12 + $0x108] sm:$0xff]
  %v626 = vld [vmem:[%s12 + $0x110] sm:$0xff]
  %v627 = vld [vmem:[%s12 + $0x118] sm:$0xff]
  %v628 = vld [vmem:[%s12 + $0x120] sm:$0xff]
  %v629 = vld [vmem:[%s12 + $0x128] sm:$0xff]
  %v630 = vld [vmem:[%s12 + $0x130] sm:$0xff]
  %v631 = vld [vmem:[%s12 + $0x138] sm:$0xff]
  %v632 = vld [vmem:[%s12 + $0x140] sm:$0xff]
  %v633 = vld [vmem:[%s12 + $0x148] sm:$0xff]
  %v634 = vld [vmem:[%s12 + $0x150] sm:$0xff]
  %v635 = vld [vmem:[%s12 + $0x158] sm:$0xff]
  %v636 = vld [vmem:[%s12 + $0x160] sm:$0xff]
  %v637 = vld [vmem:[%s12 + $0x168] sm:$0xff]
  %v638 = vld [vmem:[%s12 + $0x170] sm:$0xff]
  %v639 = vld [vmem:[%s12 + $0x178] sm:$0xff]
  %v640 = vld [vmem:[%s12 + $0x180] sm:$0xff]
  %v641 = vld [vmem:[%s12 + $0x188] sm:$0xff]
  %v642 = vld [vmem:[%s13] sm:$0x1]
  %vm643 = vcmask 130048
  %v645 = vsel %vm643, %v591, 0
  %647 = vmatpush.msra.mxu0 %v607
  %648 = vmatpush.msra.mxu0 %v606
  %649 = vmatpush.msra.mxu0 %v605
  %650 = vmatpush.msra.mxu0 %v604
  %651 = vmatpush.msra.mxu0 %v603
  %652 = vmatpush.msra.mxu0 %v602
  %653 = vmatpush.msra.mxu0 %v601
  %654 = vmatpush.msra.mxu0 %v600
  %655 = vmatpush.msra.mxu0 %v599
  %656 = vmatpush.msra.mxu0 %v598
  %657 = vmatpush.msra.mxu0 %v597
  %658 = vmatpush.msra.mxu0 %v596
  %659 = vmatpush.msra.mxu0 %v595
  %660 = vmatpush.msra.mxu0 %v594
  %661 = vmatpush.msra.mxu0 %v593
  %662 = vmatpush.msra.mxu0 %v592
  %663 = vmatmul.f32.gmra.mxu0 %v588
  %v664 = vpop.f32.mrf.mxu0
  %v665 = vadd.f32 %v642, %v664
  %666 = vdwg.mxu0
  %667 = vmatpush.msra.mxu0 %v623
  %668 = vmatpush.msra.mxu0 %v622
  %669 = vmatpush.msra.mxu0 %v621
  %670 = vmatpush.msra.mxu0 %v620
  %671 = vmatpush.msra.mxu0 %v619
  %672 = vmatpush.msra.mxu0 %v618
  %673 = vmatpush.msra.mxu0 %v617
  %674 = vmatpush.msra.mxu0 %v616
  %675 = vmatpush.msra.mxu0 %v615
  %676 = vmatpush.msra.mxu0 %v614
  %677 = vmatpush.msra.mxu0 %v613
  %678 = vmatpush.msra.mxu0 %v612
  %679 = vmatpush.msra.mxu0 %v611
  %680 = vmatpush.msra.mxu0 %v610
  %681 = vmatpush.msra.mxu0 %v609
  %682 = vmatpush.msra.mxu0 %v608
  %683 = vmatmul.f32.gmra.mxu0 %v589
  %v684 = vpop.f32.mrf.mxu0
  %v685 = vadd.f32 %v665, %v684
  %686 = vdwg.mxu0
  %687 = vmatpush.msra.mxu0 %v639
  %688 = vmatpush.msra.mxu0 %v638
  %689 = vmatpush.msra.mxu0 %v637
  %690 = vmatpush.msra.mxu0 %v636
  %691 = vmatpush.msra.mxu0 %v635
  %692 = vmatpush.msra.mxu0 %v634
  %693 = vmatpush.msra.mxu0 %v633
  %694 = vmatpush.msra.mxu0 %v632
  %695 = vmatpush.msra.mxu0 %v631
  %696 = vmatpush.msra.mxu0 %v630
  %697 = vmatpush.msra.mxu0 %v629
  %698 = vmatpush.msra.mxu0 %v628
  %699 = vmatpush.msra.mxu0 %v627
  %700 = vmatpush.msra.mxu0 %v626
  %701 = vmatpush.msra.mxu0 %v625
  %702 = vmatpush.msra.mxu0 %v624
  %703 = vmatmul.f32.gmra.mxu0 %v590
  %v704 = vpop.f32.mrf.mxu0
  %v705 = vadd.f32 %v685, %v704
  %706 = vdwg.mxu0
  %707 = vmatpush.msra.mxu0 0.0
  %708 = vmatpush.msra.mxu0 0.0
  %709 = vmatpush.msra.mxu0 0.0
  %710 = vmatpush.msra.mxu0 0.0
  %711 = vmatpush.msra.mxu0 0.0
  %712 = vmatpush.msra.mxu0 0.0
  %713 = vmatpush.msra.mxu0 0.0
  %714 = vmatpush.msra.mxu0 0.0
  %715 = vmatpush.msra.mxu0 0.0
  %716 = vmatpush.msra.mxu0 0.0
  %717 = vmatpush.msra.mxu0 0.0
  %718 = vmatpush.msra.mxu0 0.0
  %719 = vmatpush.msra.mxu0 0.0
  %720 = vmatpush.msra.mxu0 0.0
  %721 = vmatpush.msra.mxu0 %v641
  %722 = vmatpush.msra.mxu0 %v640
  %723 = vmatmul.f32.gmra.mxu0 %v645
  %v724 = vpop.f32.mrf.mxu0
  %v725 = vadd.f32 %v705, %v724
  %726 = vdwg.mxu0
  %vm727 = vcmask 188416
  %728 = vst.msk [vmem:[%s14] sm:$0x1] %vm727, %v725
  // Predicated region
  $region58: #{gcn_net_forward.1} parent=0 // pred_check
    _
  $region59: #{gcn_net_forward.1} parent=0 // pred_check_branch
    %730 = sbr.rel (0) target = $region61
  $region60: #{gcn_net_forward.1} parent=0 // pred_region
    _
  $region61: #{gcn_net_forward.1} parent=0 // pred_fallthru
    _
  // Predicated region
  $region62: #{gcn_net_forward.1} parent=0 // pred_check
    _
  $region63: #{gcn_net_forward.1} parent=0 // pred_check_branch
    %732 = sbr.rel (0) target = $region65
  $region64: #{gcn_net_forward.1} parent=0 // pred_region
    _
  $region65: #{gcn_net_forward.1} parent=0 // pred_fallthru
    _
  // Predicated region
  $region66: #{gcn_net_forward.1} parent=0 // pred_check
    _
  $region67: #{gcn_net_forward.1} parent=0 // pred_check_branch
    %734 = sbr.rel (0) target = $region69
  $region68: #{gcn_net_forward.1} parent=0 // pred_region
    _
  $region69: #{gcn_net_forward.1} parent=0 // pred_fallthru
    _
  // Predicated region
  $region70: #{gcn_net_forward.1} parent=0 // pred_check
    _
  $region71: #{gcn_net_forward.1} parent=0 // pred_check_branch
    %736 = sbr.rel (0) target = $region73
  $region72: #{gcn_net_forward.1} parent=0 // pred_region
    _
  $region73: #{gcn_net_forward.1} parent=0 // pred_fallthru
    _

</llo_original>
